<compile_context>
chip_gen: v7x
topology: tpu7x:2x2x1
jax: 0.10.0
libtpu: 0.0.40
codegen_flags: <defaults>
</compile_context>

<pallas_src>
import jax
import jax.numpy as jnp
from jax.experimental import pallas as pl
from jax.experimental.pallas import tpu as pltpu


def _round_up(x, m):
    return ((x + m - 1) // m) * m


def critic_mlp_kernel(obs_ref, act_ref, w_obs_ref, w_act_ref, b01_ref,
                      w2_ref, b2_ref, out_ref):
    """out = sum(ReLU(obs @ W01_obs + act * w01_act + b01) * w2, -1) + b2."""
    # Fused Linear0+Linear1 (valid: no activation between them in the reference).
    h = jnp.dot(obs_ref[...], w_obs_ref[...], preferred_element_type=jnp.float32)
    h = h + act_ref[...] * w_act_ref[...] + b01_ref[...]     # broadcast VPU madd (f32)
    h = jnp.maximum(h, 0.0)                                  # ReLU
    # Final Linear(H, 1): VPU multiply + lane reduction (XLU), no padded MXU pass.
    v = jnp.sum(h * w2_ref[...], axis=-1, keepdims=True) + b2_ref[...]
    out_ref[...] = v.astype(out_ref.dtype)


def fuse_critic_params(params, obs_dim):
    """One-time algebraic fusion + layout prep of the PyTorch-style parameters."""
    w0, b0, w1, b1, w2, b2 = params
    hidden = w1.shape[0]
    # Fuse Linear0 and Linear1 (no nonlinearity between them).
    w01 = (w0 @ w1).astype(jnp.float32)                          # (obs_dim+1, H)
    b01 = (b0 @ w1 + b1).reshape(1, hidden).astype(jnp.float32)  # (1, H)
    w_obs = w01[:obs_dim]                                        # (obs_dim, H)
    w_act = w01[obs_dim:obs_dim + 1]                             # (1, H) action row
    w2_row = w2.reshape(1, hidden).astype(jnp.float32)           # (1, H)
    b2_s = b2.reshape(1, 1).astype(jnp.float32)                  # (1, 1)
    return (w_obs, w_act, b01, w2_row, b2_s)


def _choose_tile(batch, block_b):
    """Batch tile: multiple of 8 (or == B when B < 8), >= 2 tiles when possible."""
    if batch <= 8:
        return batch                              # single block == full dim (legal)
    block_b = max(8, (block_b // 8) * 8)          # enforce (8,128) sublane rule
    half = _round_up(-(-batch // 2), 8)           # >= 2 parallel tiles for v7x's 2 TCs
    return max(8, min(block_b, half))


def critic_forward(obs, action, fused_params, *, block_b=4096,
                   compute_dtype=jnp.float32):
    """Pallas-backed Critic forward: obs (B, obs_dim), action (B,) -> (B, 1)."""
    w_obs, w_act, b01, w2_row, b2_s = fused_params
    B, obs_dim = obs.shape
    hidden = w_obs.shape[1]

    # Only the MXU operands (obs, first-layer weights) take compute_dtype;
    # everything on the VPU/XLU path stays f32.
    obs = obs.astype(compute_dtype)
    w_obs = w_obs.astype(compute_dtype)
    act_col = action.astype(jnp.float32).reshape(B, 1)

    tb = _choose_tile(B, block_b)
    grid = (pl.cdiv(B, tb),)                      # ragged last block handled by Pallas

    resident = lambda arr: pl.BlockSpec(arr.shape, lambda i: (0, 0))

    in_bytes = obs.dtype.itemsize
    cost = pl.CostEstimate(
        flops=2 * B * obs_dim * hidden + 7 * B * hidden,
        transcendentals=0,
        bytes_accessed=(B * obs_dim * in_bytes          # obs read
                        + 4 * B * 2                     # act read + value write
                        + in_bytes * obs_dim * hidden   # fused weights
                        + 4 * (3 * hidden + 1)),        # w_act, b01, w2, b2
    )

    out = pl.pallas_call(
        critic_mlp_kernel,
        out_shape=jax.ShapeDtypeStruct((B, 1), jnp.float32),
        grid=grid,
        in_specs=[
            pl.BlockSpec((tb, obs_dim), lambda i: (i, 0)),    # obs tile
            pl.BlockSpec((tb, 1), lambda i: (i, 0)),          # action tile
            resident(w_obs), resident(w_act), resident(b01),  # VMEM-resident params
            resident(w2_row), resident(b2_s),
        ],
        out_specs=pl.BlockSpec((tb, 1), lambda i: (i, 0)),
        compiler_params=pltpu.CompilerParams(
            dimension_semantics=("parallel",)),
        cost_estimate=cost,
    )(obs, act_col, w_obs, w_act, b01, w2_row, b2_s)

    return out


def init_critic_params(key, obs_dim, hidden_dim):
    """Deterministic PyTorch-style Linear init: U(-1/sqrt(fan_in), 1/sqrt(fan_in))."""
    def linear(k, fan_in, fan_out):
        kw, kb = jax.random.split(k)
        bound = 1.0 / jnp.sqrt(fan_in)
        # Stored as (in, out) so forward computes x @ W (== x @ W_pt.T).
        w = jax.random.uniform(kw, (fan_in, fan_out), jnp.float32, -bound, bound)
        b = jax.random.uniform(kb, (fan_out,), jnp.float32, -bound, bound)
        return w, b

    k0, k1, k2 = jax.random.split(key, 3)
    w0, b0 = linear(k0, obs_dim + 1, hidden_dim)   # Linear(obs_dim+1, H)
    w1, b1 = linear(k1, hidden_dim, hidden_dim)    # Linear(H, H) (+ ReLU)
    w2, b2 = linear(k2, hidden_dim, 1)             # Linear(H, 1)
    return (w0, b0, w1, b1, w2, b2)


def critic_reference(obs, action, params):
    """Pure-JAX reference mirroring the (unfused) PyTorch forward."""
    w0, b0, w1, b1, w2, b2 = params
    x = jnp.concatenate([obs, action[:, None]], axis=-1)
    h0 = x @ w0 + b0
    h1 = jnp.maximum(h0 @ w1 + b1, 0.0)
    return h1 @ w2 + b2


if __name__ == "__main__":
    key = jax.random.PRNGKey(0)
    k_params, k_obs, k_act, k_obs2, k_act2, k_obs3, k_act3 = jax.random.split(key, 7)

    batch = 8
    obs_dim = 16
    act_dim = 4        # present in __init__, unused by forward (action enters as a scalar column)
    hidden_dim = 32

    params = init_critic_params(k_params, obs_dim, hidden_dim)
    fused = fuse_critic_params(params, obs_dim)

    # Small batch, single tile, f32.
    obs = jax.random.normal(k_obs, (batch, obs_dim), jnp.float32)
    action = jax.random.normal(k_act, (batch,), jnp.float32)
    value = jax.block_until_ready(critic_forward(obs, action, fused))
    ref = critic_reference(obs, action, params)
    assert value.shape == (batch, 1)
    assert jnp.allclose(value, ref, atol=1e-5, rtol=1e-4), "mismatch (small batch)"

    # Multi-tile grid with a ragged last block (no wrapper-side padding), f32.
    batch2 = 200
    obs2 = jax.random.normal(k_obs2, (batch2, obs_dim), jnp.float32)
    action2 = jax.random.normal(k_act2, (batch2,), jnp.float32)
    value2 = jax.block_until_ready(critic_forward(obs2, action2, fused, block_b=64))
    ref2 = critic_reference(obs2, action2, params)
    assert value2.shape == (batch2, 1)
    assert jnp.allclose(value2, ref2, atol=1e-5, rtol=1e-4), "mismatch (ragged tiles)"

    # bf16 obs/first-layer-weight path (halves dominant HBM read on v6e/v7x).
    batch3 = 256
    obs3 = jax.random.normal(k_obs3, (batch3, obs_dim), jnp.float32)
    action3 = jax.random.normal(k_act3, (batch3,), jnp.float32)
    value3 = jax.block_until_ready(
        critic_forward(obs3, action3, fused, compute_dtype=jnp.bfloat16))
    ref3 = critic_reference(obs3, action3, params)
    assert value3.shape == (batch3, 1)
    assert jnp.allclose(value3, ref3, atol=5e-2, rtol=5e-2), "mismatch (bf16 path)"

    print("KERNEL_OK")
</pallas_src>

<mosaic_0001>
module attributes {stable_mosaic.version = 11 : i64} {
  func.func @critic_mlp_kernel(%arg0: i32, %arg1: memref<8x16xf32, #tpu.memory_space<vmem>>, %arg2: memref<8x1xf32, #tpu.memory_space<vmem>>, %arg3: memref<16x32xf32, #tpu.memory_space<vmem>>, %arg4: memref<1x32xf32, #tpu.memory_space<vmem>>, %arg5: memref<1x32xf32, #tpu.memory_space<vmem>>, %arg6: memref<1x32xf32, #tpu.memory_space<vmem>>, %arg7: memref<1x1xf32, #tpu.memory_space<vmem>>, %arg8: memref<8x1xf32, #tpu.memory_space<vmem>>) attributes {dimension_semantics = [#tpu.dimension_semantics<parallel>], iteration_bounds = array<i64: 1>, scalar_prefetch = 0 : i64, scratch_operands = 0 : i64, tpu.core_type = #tpu.core_type<tc>, window_params = [{transform_indices = @transform_0, window_bounds = array<i64: 8, 16>}, {transform_indices = @transform_1, window_bounds = array<i64: 8, 1>}, {pipeline_mode = #tpu.pipeline_mode<synchronous>, transform_indices = @transform_2, window_bounds = array<i64: 16, 32>}, {pipeline_mode = #tpu.pipeline_mode<synchronous>, transform_indices = @transform_3, window_bounds = array<i64: 1, 32>}, {pipeline_mode = #tpu.pipeline_mode<synchronous>, transform_indices = @transform_4, window_bounds = array<i64: 1, 32>}, {pipeline_mode = #tpu.pipeline_mode<synchronous>, transform_indices = @transform_5, window_bounds = array<i64: 1, 32>}, {pipeline_mode = #tpu.pipeline_mode<synchronous>, transform_indices = @transform_6, window_bounds = array<i64: 1, 1>}, {transform_indices = @transform_7, window_bounds = array<i64: 8, 1>}]} {
    %c0 = arith.constant 0 : index
    %c0_0 = arith.constant 0 : index
    %0 = vector.load %arg1[%c0, %c0_0] : memref<8x16xf32, #tpu.memory_space<vmem>>, vector<8x16xf32>
    %c0_1 = arith.constant 0 : index
    %c0_2 = arith.constant 0 : index
    %1 = vector.load %arg3[%c0_1, %c0_2] : memref<16x32xf32, #tpu.memory_space<vmem>>, vector<16x32xf32>
    %cst = arith.constant dense<0.000000e+00> : vector<8x32xf32>
    %2 = tpu.matmul %0, %1, %cst {dimension_numbers = #tpu.dot_dimension_numbers<[1], [0], [0], [1], [0, 0, 1, 1], [], []>} : vector<8x16xf32>, vector<16x32xf32>, vector<8x32xf32> -> vector<8x32xf32>
    %c0_3 = arith.constant 0 : index
    %c0_4 = arith.constant 0 : index
    %3 = vector.load %arg2[%c0_3, %c0_4] : memref<8x1xf32, #tpu.memory_space<vmem>>, vector<8x1xf32>
    %c0_5 = arith.constant 0 : index
    %c0_6 = arith.constant 0 : index
    %4 = vector.load %arg4[%c0_5, %c0_6] : memref<1x32xf32, #tpu.memory_space<vmem>>, vector<1x32xf32>
    %5 = vector.broadcast %3 : vector<8x1xf32> to vector<8x32xf32>
    %6 = vector.broadcast %4 : vector<1x32xf32> to vector<8x32xf32>
    %7 = arith.mulf %5, %6 : vector<8x32xf32>
    %8 = arith.addf %2, %7 : vector<8x32xf32>
    %c0_7 = arith.constant 0 : index
    %c0_8 = arith.constant 0 : index
    %9 = vector.load %arg5[%c0_7, %c0_8] : memref<1x32xf32, #tpu.memory_space<vmem>>, vector<1x32xf32>
    %10 = vector.broadcast %9 : vector<1x32xf32> to vector<8x32xf32>
    %11 = arith.addf %8, %10 : vector<8x32xf32>
    %cst_9 = arith.constant 0.000000e+00 : f32
    %12 = vector.broadcast %cst_9 : f32 to vector<8x32xf32>
    %13 = arith.maximumf %11, %12 : vector<8x32xf32>
    %c0_10 = arith.constant 0 : index
    %c0_11 = arith.constant 0 : index
    %14 = vector.load %arg6[%c0_10, %c0_11] : memref<1x32xf32, #tpu.memory_space<vmem>>, vector<1x32xf32>
    %15 = vector.broadcast %14 : vector<1x32xf32> to vector<8x32xf32>
    %16 = arith.mulf %13, %15 : vector<8x32xf32>
    %cst_12 = arith.constant dense<0.000000e+00> : vector<8xf32>
    %17 = vector.multi_reduction <add>, %16, %cst_12 [1] : vector<8x32xf32> to vector<8xf32>
    %18 = vector.shape_cast %17 : vector<8xf32> to vector<8x1xf32>
    %c0_13 = arith.constant 0 : index
    %c0_14 = arith.constant 0 : index
    %19 = vector.load %arg7[%c0_13, %c0_14] : memref<1x1xf32, #tpu.memory_space<vmem>>, vector<1x1xf32>
    %20 = vector.broadcast %19 : vector<1x1xf32> to vector<8x1xf32>
    %21 = arith.addf %18, %20 : vector<8x1xf32>
    %c0_15 = arith.constant 0 : index
    %c0_16 = arith.constant 0 : index
    %22 = vector.load %arg8[%c0_15, %c0_16] : memref<8x1xf32, #tpu.memory_space<vmem>>, vector<8x1xf32>
    tpu.vector_store %arg8[%c0_15, %c0_16], %21 {strides = array<i32>} : memref<8x1xf32, #tpu.memory_space<vmem>>, vector<8x1xf32>,
    return
  }
  func.func @transform_0(%arg0: i32) -> (i32, i32) {
    %c0_i32 = arith.constant 0 : i32
    %c0_i32_0 = arith.constant 0 : i32
    return %arg0, %c0_i32 : i32, i32
  }
  func.func @transform_1(%arg0: i32) -> (i32, i32) {
    %c0_i32 = arith.constant 0 : i32
    %c0_i32_0 = arith.constant 0 : i32
    return %arg0, %c0_i32 : i32, i32
  }
  func.func @transform_2(%arg0: i32) -> (i32, i32) {
    %c0_i32 = arith.constant 0 : i32
    %c0_i32_0 = arith.constant 0 : i32
    %c0_i32_1 = arith.constant 0 : i32
    return %c0_i32, %c0_i32_0 : i32, i32
  }
  func.func @transform_3(%arg0: i32) -> (i32, i32) {
    %c0_i32 = arith.constant 0 : i32
    %c0_i32_0 = arith.constant 0 : i32
    %c0_i32_1 = arith.constant 0 : i32
    return %c0_i32, %c0_i32_0 : i32, i32
  }
  func.func @transform_4(%arg0: i32) -> (i32, i32) {
    %c0_i32 = arith.constant 0 : i32
    %c0_i32_0 = arith.constant 0 : i32
    %c0_i32_1 = arith.constant 0 : i32
    return %c0_i32, %c0_i32_0 : i32, i32
  }
  func.func @transform_5(%arg0: i32) -> (i32, i32) {
    %c0_i32 = arith.constant 0 : i32
    %c0_i32_0 = arith.constant 0 : i32
    %c0_i32_1 = arith.constant 0 : i32
    return %c0_i32, %c0_i32_0 : i32, i32
  }
  func.func @transform_6(%arg0: i32) -> (i32, i32) {
    %c0_i32 = arith.constant 0 : i32
    %c0_i32_0 = arith.constant 0 : i32
    %c0_i32_1 = arith.constant 0 : i32
    return %c0_i32, %c0_i32_0 : i32, i32
  }
  func.func @transform_7(%arg0: i32) -> (i32, i32) {
    %c0_i32 = arith.constant 0 : i32
    %c0_i32_0 = arith.constant 0 : i32
    return %arg0, %c0_i32 : i32, i32
  }
}

</mosaic_0001>

<llo_original>
// kernel: tpu_custom_call.1
$region0: #{tpu_custom_call.1}
  #allocation0 [shape = 'u32[]', space=smem, size = 0x4, offset = 0x4, fixed_abs, tag = 'smem constant byte address 0x4 - core index']
  #allocation1 [shape = 'u32[144,128]{1,0:T(1,128)}', space=vmem, size = 0x12000, scoped, tag = 'internal scratch']
  #allocation2 [shape = 'f32[1,1]{1,0:T(1,128)S(1)}', space=vmem, size = 0x200, scoped, tag = 'scoped memory for tpu_custom_call.1']
  %s0 = inlined_call_operand.hbm [shape: f32[8,16], index: 0, kind: input, shape index: {}]
  %s1 = inlined_call_operand.vmem [shape: f32[8,1], index: 1, kind: input, shape index: {}]
  %s2 = inlined_call_operand.vmem [shape: f32[16,32], index: 2, kind: input, shape index: {}]
  %s3 = inlined_call_operand.vmem [shape: f32[1,32], index: 3, kind: input, shape index: {}]
  %s4 = inlined_call_operand.vmem [shape: f32[1,32], index: 4, kind: input, shape index: {}]
  %s5 = inlined_call_operand.vmem [shape: f32[1,32], index: 5, kind: input, shape index: {}]
  %s6 = inlined_call_operand.<no memory space> [shape: f32[1,1], index: 6, kind: input, shape index: {}]
  %s7 = inlined_call_operand.vmem [shape: f32[8,1], index: 7, kind: output, shape index: {}]
  %s8 = sld [smem:[#allocation0]]
  $region42: #{tpu_custom_call.1} parent=0
    _
  %s10 = ssub.s32 1, %s8
  %s11 = scalar_select 0, %s10, %s8
  %v12 = vstv %s6
  %13 = vst [vmem:[#allocation2] sm:$0x1] %v12
  $region1: #{tpu_custom_call.1} parent=0
    #allocation3 [shape = 'u8[4096]{0}', space=vmem, size = 0x1000, scoped, tag = 'input window, operand 0, single buffered']
    #allocation4 [shape = 's32[1]{0}', space=sflag, size = 0x4, scoped, tag = 'scoped memory for tpu_custom_call.1']
    %14 = vsyncpa [#allocation4], 0
    // Predicated region
    $region2: #{tpu_custom_call.1} parent=1 // pred_check
      _
    $region3: #{tpu_custom_call.1} parent=1 // pred_check_branch
      %16 = sbr.rel (0) target = $region5
    $region4: #{tpu_custom_call.1} parent=1 // pred_region
      %s18 = ssub.s32 128, 128
      %19 = vsyncadd [#allocation4], %s18
      %s21 = sshll.u32 [#allocation3], 4
      %s22 = int_to_ptr.vmem [resolvable:$true] %s21
      %24 = dma.hbm_to_vmem [thread:$0]  %s0, 128, %s22, [#allocation4]
    $region5: #{tpu_custom_call.1} parent=1 // pred_fallthru
      _
    // Predicated region
    $region6: #{tpu_custom_call.1} parent=1 // pred_check
      _
    $region7: #{tpu_custom_call.1} parent=1 // pred_check_branch
      %26 = sbr.rel (0) target = $region9
    $region8: #{tpu_custom_call.1} parent=1 // pred_region
      _
    $region9: #{tpu_custom_call.1} parent=1 // pred_fallthru
      _
    // Predicated region
    $region10: #{tpu_custom_call.1} parent=1 // pred_check
      _
    $region11: #{tpu_custom_call.1} parent=1 // pred_check_branch
      %28 = sbr.rel (0) target = $region13
    $region12: #{tpu_custom_call.1} parent=1 // pred_region
      _
    $region13: #{tpu_custom_call.1} parent=1 // pred_fallthru
      _
    // Predicated region
    $region14: #{tpu_custom_call.1} parent=1 // pred_check
      _
    $region15: #{tpu_custom_call.1} parent=1 // pred_check_branch
      %30 = sbr.rel (0) target = $region17
    $region16: #{tpu_custom_call.1} parent=1 // pred_region
      _
    $region17: #{tpu_custom_call.1} parent=1 // pred_fallthru
      _
    // Predicated region
    $region18: #{tpu_custom_call.1} parent=1 // pred_check
      _
    $region19: #{tpu_custom_call.1} parent=1 // pred_check_branch
      %32 = sbr.rel (0) target = $region21
    $region20: #{tpu_custom_call.1} parent=1 // pred_region
      _
    $region21: #{tpu_custom_call.1} parent=1 // pred_fallthru
      _
    // Predicated region
    $region22: #{tpu_custom_call.1} parent=1 // pred_check
      _
    $region23: #{tpu_custom_call.1} parent=1 // pred_check_branch
      %34 = sbr.rel (0) target = $region25
    $region24: #{tpu_custom_call.1} parent=1 // pred_region
      _
    $region25: #{tpu_custom_call.1} parent=1 // pred_fallthru
      _
    // Predicated region
    $region26: #{tpu_custom_call.1} parent=1 // pred_check
      _
    $region27: #{tpu_custom_call.1} parent=1 // pred_check_branch
      %36 = sbr.rel (0) target = $region29
    $region28: #{tpu_custom_call.1} parent=1 // pred_region
      _
    $region29: #{tpu_custom_call.1} parent=1 // pred_fallthru
      _
    // Predicated region
    $region30: #{tpu_custom_call.1} parent=1 // pred_check
      _
    $region31: #{tpu_custom_call.1} parent=1 // pred_check_branch
      %38 = sbr.rel (0) target = $region33
    $region32: #{tpu_custom_call.1} parent=1 // pred_region
      %39 = dma.done [#allocation4], 128
    $region33: #{tpu_custom_call.1} parent=1 // pred_fallthru
      _
    %v40 = vld [vmem:[#allocation3] sm:$0xff]
    %v41 = vld [vmem:[%s2] sm:$0xff]
    %v42 = vld [vmem:[%s2 + $0x8] sm:$0xff]
    %v43 = vld [vmem:[%s1] sm:$0xff]
    %v44 = vld [vmem:[%s3] sm:$0x1]
    %46 = vset.pattern.permute.xlu0 0
    %47 = vperm.xlu0 %46, %v43
    %v48 = vpop.permute.xlu0 %47
    %v51 = vlaneseq
    %v52 = vshrl.u32 %v51, 7
    %v53 = vsub.s32 0, %v52
    %v54 = vrot.slane %v44, %v53
    %v56 = vmul.f32 %v48, %v54
    %vm57 = vcmask 130048
    %v59 = vsel %vm57, %v40, 0
    %61 = vmatprep.subr.mxu0 0.0
    %62 = vmatpush1.msra.mxu0 %v41
    %63 = vmatprep.subr.mxu0 0.0
    %64 = vmatpush1.msra.mxu0 %v42
    %65 = vmatprep.subr.mxu0 0.0
    %66 = vmatpush1.msra.mxu0 0.0
    %67 = vmatprep.subr.mxu0 0.0
    %68 = vmatpush1.msra.mxu0 0.0
    %69 = vmatprep.subr.mxu0 0.0
    %70 = vmatpush1.msra.mxu0 0.0
    %71 = vmatprep.subr.mxu0 0.0
    %72 = vmatpush1.msra.mxu0 0.0
    %73 = vmatprep.subr.mxu0 0.0
    %74 = vmatpush1.msra.mxu0 0.0
    %75 = vmatprep.subr.mxu0 0.0
    %76 = vmatpush1.msra.mxu0 0.0
    %77 = vmatprep.subr.mxu0 0.0
    %78 = vmatpush1.msra.mxu0 0.0
    %79 = vmatprep.subr.mxu0 0.0
    %80 = vmatpush1.msra.mxu0 0.0
    %81 = vmatprep.subr.mxu0 0.0
    %82 = vmatpush1.msra.mxu0 0.0
    %83 = vmatprep.subr.mxu0 0.0
    %84 = vmatpush1.msra.mxu0 0.0
    %85 = vmatprep.subr.mxu0 0.0
    %86 = vmatpush1.msra.mxu0 0.0
    %87 = vmatprep.subr.mxu0 0.0
    %88 = vmatpush1.msra.mxu0 0.0
    %89 = vmatprep.subr.mxu0 0.0
    %90 = vmatpush1.msra.mxu0 0.0
    %91 = vmatprep.subr.mxu0 0.0
    %92 = vmatpush1.msra.mxu0 0.0
    %93 = vmatprep.subr.mxu0 0.0
    %94 = vmatpush1.msra.mxu0 0.0
    %95 = vmatprep.subr.mxu0 0.0
    %96 = vmatpush1.msra.mxu0 0.0
    %97 = vmatprep.subr.mxu0 0.0
    %98 = vmatpush1.msra.mxu0 0.0
    %99 = vmatprep.subr.mxu0 0.0
    %100 = vmatpush1.msra.mxu0 0.0
    %101 = vmatprep.subr.mxu0 0.0
    %102 = vmatpush1.msra.mxu0 0.0
    %103 = vmatprep.subr.mxu0 0.0
    %104 = vmatpush1.msra.mxu0 0.0
    %105 = vmatprep.subr.mxu0 0.0
    %106 = vmatpush1.msra.mxu0 0.0
    %107 = vmatprep.subr.mxu0 0.0
    %108 = vmatpush1.msra.mxu0 0.0
    %109 = vmatprep.subr.mxu0 0.0
    %110 = vmatpush1.msra.mxu0 0.0
    %111 = vmatprep.subr.mxu0 0.0
    %112 = vmatpush1.msra.mxu0 0.0
    %113 = vmatprep.subr.mxu0 0.0
    %114 = vmatpush1.msra.mxu0 0.0
    %115 = vmatprep.subr.mxu0 0.0
    %116 = vmatpush1.msra.mxu0 0.0
    %117 = vmatprep.subr.mxu0 0.0
    %118 = vmatpush1.msra.mxu0 0.0
    %119 = vmatprep.subr.mxu0 0.0
    %120 = vmatpush1.msra.mxu0 0.0
    %121 = vmatprep.subr.mxu0 0.0
    %122 = vmatpush1.msra.mxu0 0.0
    %123 = vmatprep.subr.mxu0 0.0
    %124 = vmatpush1.msra.mxu0 0.0
    %125 = vmatprep.mubr.f32.mxu0 0.0
    %126 = vmatmul.mubr.f32.gmra.mrb[0].mxu0 %v59
    %v127 = vpop.f32.mrb[0].mxu0
    %v128 = vadd.f32 %v56, %v127
    %v129 = vpop.f32.mrb[0].mxu0
    %130 = vdwg.mxu0
    %v131 = vld [vmem:[%s4] sm:$0x1]
    %v133 = vlaneseq
    %v134 = vshrl.u32 %v133, 7
    %v135 = vsub.s32 0, %v134
    %v136 = vrot.slane %v131, %v135
    %v138 = vadd.f32 %v128, %v136
    %v139 = vmax.f32 %v138, 0.0
    %v140 = vld [vmem:[%s5] sm:$0x1]
    %v142 = vlaneseq
    %v143 = vshrl.u32 %v142, 7
    %v144 = vsub.s32 0, %v143
    %v145 = vrot.slane %v140, %v144
    %v147 = vmul.f32 %v139, %v145
    %vm148 = vcmask 261120
    %v149 = vsel %vm148, %v147, 0.0
    %150 = vadd.xlane.f32.xlu0 %v149
    %v151 = vpop.xlane.xlu0 %150
    %v152 = vld [vmem:[#allocation2] sm:$0x1]
    %v154 = vlaneseq
    %v155 = vshrl.u32 %v154, 7
    %v156 = vsub.s32 0, %v155
    %v157 = vrot.slane %v152, %v156
    %v159 = vadd.f32 %v151, %v157
    %vm160 = vcmask 7168
    %161 = vst.msk [vmem:[%s7] sm:$0xff] %vm160, %v159
    // Predicated region
    $region34: #{tpu_custom_call.1} parent=1 // pred_check
      _
    $region35: #{tpu_custom_call.1} parent=1 // pred_check_branch
      %163 = sbr.rel (0) target = $region37
    $region36: #{tpu_custom_call.1} parent=1 // pred_region
      _
    $region37: #{tpu_custom_call.1} parent=1 // pred_fallthru
      _
    // Predicated region
    $region38: #{tpu_custom_call.1} parent=1 // pred_check
      _
    $region39: #{tpu_custom_call.1} parent=1 // pred_check_branch
      %165 = sbr.rel (0) target = $region41
    $region40: #{tpu_custom_call.1} parent=1 // pred_region
      _
    $region41: #{tpu_custom_call.1} parent=1 // pred_fallthru
      _
    %166 = vsyncpa [#allocation4], 1

</llo_original>
